<compile_context>
chip_gen: v7x
topology: tpu7x:2x2x1
jax: 0.10.0
libtpu: 0.0.40
codegen_flags: <defaults>
</compile_context>

<pallas_src>
import functools

import jax
import jax.numpy as jnp
from jax.experimental import pallas as pl
from jax.experimental.pallas import tpu as pltpu

EPS = 1e-5
LANE = 128
SUBLANE = 8


def _round_up(n, m):
    return ((n + m - 1) // m) * m


def _write_partial_stats(stat_ref, h, *, tile_rows, total_rows):
    """Per-tile partial [sum; sum-of-squares] rows (padded to 8 sublanes)."""
    if total_rows % tile_rows != 0:
        # Mask padded batch rows out of the statistics (last partial tile only).
        row = (jax.lax.broadcasted_iota(jnp.int32, h.shape, 0)
               + pl.program_id(0) * tile_rows)
        h = jnp.where(row < total_rows, h, 0.0)
    s = jnp.sum(h, axis=0, keepdims=True)
    ss = jnp.sum(h * h, axis=0, keepdims=True)
    pad = jnp.zeros((SUBLANE - 2, h.shape[1]), jnp.float32)
    stat_ref[...] = jnp.concatenate([s, ss, pad], axis=0)


def _layer1_kernel(x_ref, w_ref, b_ref, h_ref, stat_ref, *, tile_rows, total_rows):
    # Linear(input_dim, hidden) + ReLU; bf16 MXU operands, f32 accumulation.
    h = jnp.dot(x_ref[...].astype(jnp.bfloat16), w_ref[...],
                preferred_element_type=jnp.float32) + b_ref[...]
    h = jnp.maximum(h, 0.0)
    h_ref[...] = h
    _write_partial_stats(stat_ref, h, tile_rows=tile_rows, total_rows=total_rows)


def _layer2_kernel(h_in_ref, scale_ref, shift_ref, w_ref, b_ref, h_ref, stat_ref,
                   *, tile_rows, total_rows):
    # BatchNorm1 folded into one FMA, then Linear(hidden, hidden) + ReLU.
    bn = h_in_ref[...] * scale_ref[...] + shift_ref[...]
    h = jnp.dot(bn.astype(jnp.bfloat16), w_ref[...],
                preferred_element_type=jnp.float32) + b_ref[...]
    h = jnp.maximum(h, 0.0)
    h_ref[...] = h
    _write_partial_stats(stat_ref, h, tile_rows=tile_rows, total_rows=total_rows)


def _layer3_kernel(h_in_ref, scale_ref, shift_ref, w_ref, b_ref, o_ref):
    # BatchNorm2 folded FMA, Linear(hidden, output) + Sigmoid (lane-dense out).
    bn = h_in_ref[...] * scale_ref[...] + shift_ref[...]
    z = jnp.dot(bn.astype(jnp.bfloat16), w_ref[...],
                preferred_element_type=jnp.float32) + b_ref[...]
    o_ref[...] = jax.nn.sigmoid(z)


def mydnn_forward(x, params):
    """MyDNN forward with training-mode BatchNorm (batch statistics, eps=1e-5)."""
    input_dim = params["w1"].shape[0]
    hidden = params["w1"].shape[1]
    output_dim = params["w3"].shape[1]

    x2d = x.reshape(-1, input_dim).astype(jnp.float32)
    B = x2d.shape[0]

    HP = _round_up(hidden, LANE)          # lane-dense hidden width (128)
    OP = _round_up(output_dim, LANE)      # lane-dense output width (128)
    TB = 512 if B >= 512 else _round_up(B, SUBLANE)   # batch tile rows
    nt = -(-B // TB)                      # number of batch tiles
    Bp = nt * TB

    if Bp != B:                           # pad batch rows (masked out of BN stats)
        x2d = jnp.pad(x2d, ((0, Bp - B), (0, 0)))

    def pad_cols(a, cols):
        return jnp.pad(a, ((0, 0), (0, cols - a.shape[-1])))

    # Zero-pad weights/params to lane-dense widths (padded gammas are 0 so the
    # padded columns stay exactly zero through both BN layers).
    w1 = pad_cols(params["w1"], HP).astype(jnp.bfloat16)
    w2 = jnp.pad(params["w2"],
                 ((0, HP - hidden), (0, HP - hidden))).astype(jnp.bfloat16)
    w3 = jnp.pad(params["w3"],
                 ((0, HP - hidden), (0, OP - output_dim))).astype(jnp.bfloat16)
    b1 = pad_cols(params["b1"], HP)
    b2 = pad_cols(params["b2"], HP)
    b3 = pad_cols(params["b3"], OP)
    g1 = pad_cols(params["g1"], HP)
    be1 = pad_cols(params["be1"], HP)
    g2 = pad_cols(params["g2"], HP)
    be2 = pad_cols(params["be2"], HP)

    grid = (nt,)
    cparams = pltpu.CompilerParams(
        dimension_semantics=("parallel",),       # shard batch tiles across TCs
        vmem_limit_bytes=32 * 1024 * 1024,       # explicit, v7x-safe budget
    )
    row_spec = lambda w: pl.BlockSpec((TB, w), lambda i: (i, 0))
    const_spec = lambda shape: pl.BlockSpec(shape, lambda i: (0, 0))
    stat_spec = pl.BlockSpec((SUBLANE, HP), lambda i: (i, 0))

    # ---- pass 1: Linear1 + ReLU, per-tile BN1 partial sums ----
    h1, st1 = pl.pallas_call(
        functools.partial(_layer1_kernel, tile_rows=TB, total_rows=B),
        grid=grid,
        in_specs=[row_spec(input_dim),
                  const_spec((input_dim, HP)),
                  const_spec((1, HP))],
        out_specs=(row_spec(HP), stat_spec),
        out_shape=(jax.ShapeDtypeStruct((Bp, HP), jnp.float32),
                   jax.ShapeDtypeStruct((nt * SUBLANE, HP), jnp.float32)),
        compiler_params=cparams,
    )(x2d, w1, b1)

    def fold_bn(stats, gamma, beta):
        stats = stats.reshape(nt, SUBLANE, HP)
        s = stats[:, 0, :].sum(axis=0)
        ss = stats[:, 1, :].sum(axis=0)
        mean = s / B
        var = jnp.maximum(ss / B - mean * mean, 0.0)      # biased variance
        scale = gamma * jax.lax.rsqrt(var + EPS)
        shift = beta - mean * scale
        return scale, shift                                # each (1, HP)

    scale1, shift1 = fold_bn(st1, g1, be1)

    # ---- pass 2: BN1 + Linear2 + ReLU, per-tile BN2 partial sums ----
    h2, st2 = pl.pallas_call(
        functools.partial(_layer2_kernel, tile_rows=TB, total_rows=B),
        grid=grid,
        in_specs=[row_spec(HP), const_spec((1, HP)), const_spec((1, HP)),
                  const_spec((HP, HP)), const_spec((1, HP))],
        out_specs=(row_spec(HP), stat_spec),
        out_shape=(jax.ShapeDtypeStruct((Bp, HP), jnp.float32),
                   jax.ShapeDtypeStruct((nt * SUBLANE, HP), jnp.float32)),
        compiler_params=cparams,
    )(h1, scale1, shift1, w2, b2)

    scale2, shift2 = fold_bn(st2, g2, be2)

    # ---- pass 3: BN2 + Linear3 + Sigmoid ----
    out = pl.pallas_call(
        _layer3_kernel,
        grid=grid,
        in_specs=[row_spec(HP), const_spec((1, HP)), const_spec((1, HP)),
                  const_spec((HP, OP)), const_spec((1, OP))],
        out_specs=row_spec(OP),
        out_shape=jax.ShapeDtypeStruct((Bp, OP), jnp.float32),
        compiler_params=cparams,
    )(h2, scale2, shift2, w3, b3)

    return out[:B, :output_dim]


def init_params(key, input_dim, hidden_dim, output_dim):
    """Deterministic init mimicking PyTorch defaults (uniform +/- 1/sqrt(fan_in))."""
    ks = jax.random.split(key, 6)

    def lin(kw, kb, fan_in, fan_out):
        bound = 1.0 / jnp.sqrt(jnp.float32(fan_in))
        w = jax.random.uniform(kw, (fan_in, fan_out), jnp.float32, -bound, bound)
        b = jax.random.uniform(kb, (1, fan_out), jnp.float32, -bound, bound)
        return w, b

    w1, b1 = lin(ks[0], ks[1], input_dim, hidden_dim)
    w2, b2 = lin(ks[2], ks[3], hidden_dim, hidden_dim)
    w3, b3 = lin(ks[4], ks[5], hidden_dim, output_dim)
    return {
        "w1": w1, "b1": b1,
        "g1": jnp.ones((1, hidden_dim), jnp.float32),
        "be1": jnp.zeros((1, hidden_dim), jnp.float32),
        "w2": w2, "b2": b2,
        "g2": jnp.ones((1, hidden_dim), jnp.float32),
        "be2": jnp.zeros((1, hidden_dim), jnp.float32),
        "w3": w3, "b3": b3,
    }


def _reference_forward(x, p):
    """Pure-JAX reference with matching numerics (bf16 matmul operands, f32 accum)."""
    x2 = x.reshape(-1, p["w1"].shape[0]).astype(jnp.float32)
    B = x2.shape[0]

    def mm(a, w):
        return jnp.dot(a.astype(jnp.bfloat16), w.astype(jnp.bfloat16),
                       preferred_element_type=jnp.float32)

    def bn(h, g, be):
        m = h.sum(0) / B
        v = jnp.maximum((h * h).sum(0) / B - m * m, 0.0)
        scale = g * jax.lax.rsqrt(v + EPS)
        return h * scale + (be - m * scale)

    h = jnp.maximum(mm(x2, p["w1"]) + p["b1"], 0.0)
    h = bn(h, p["g1"], p["be1"])
    h = jnp.maximum(mm(h, p["w2"]) + p["b2"], 0.0)
    h = bn(h, p["g2"], p["be2"])
    return jax.nn.sigmoid(mm(h, p["w3"]) + p["b3"])


if __name__ == "__main__":
    # BatchNorm1d(32) in the module pins hidden_dim = 32.
    INPUT_DIM, HIDDEN_DIM, OUTPUT_DIM = 16, 32, 4
    BATCH = 12   # not a multiple of the row tile -> exercises partial-tile masking

    key = jax.random.PRNGKey(0)
    k_x, k_p = jax.random.split(key)
    x = jax.random.normal(k_x, (BATCH, INPUT_DIM), jnp.float32)
    params = init_params(k_p, INPUT_DIM, HIDDEN_DIM, OUTPUT_DIM)

    out = jax.jit(mydnn_forward)(x, params)
    out = jax.block_until_ready(out)

    expected = _reference_forward(x, params)
    assert out.shape == (BATCH, OUTPUT_DIM)
    assert jnp.allclose(out, expected, atol=1e-3, rtol=1e-3), \
        float(jnp.abs(out - expected).max())
    print("KERNEL_OK")
</pallas_src>

<mosaic_0001>
module attributes {stable_mosaic.version = 11 : i64} {
  func.func @_layer1_kernel(%arg0: i32, %arg1: memref<16x16xf32, #tpu.memory_space<vmem>>, %arg2: memref<16x128xbf16, #tpu.memory_space<vmem>>, %arg3: memref<1x128xf32, #tpu.memory_space<vmem>>, %arg4: memref<16x128xf32, #tpu.memory_space<vmem>>, %arg5: memref<8x128xf32, #tpu.memory_space<vmem>>) attributes {dimension_semantics = [#tpu.dimension_semantics<parallel>], iteration_bounds = array<i64: 1>, scalar_prefetch = 0 : i64, scratch_operands = 0 : i64, tpu.core_type = #tpu.core_type<tc>, window_params = [{transform_indices = @transform_0, window_bounds = array<i64: 16, 16>}, {pipeline_mode = #tpu.pipeline_mode<synchronous>, transform_indices = @transform_1, window_bounds = array<i64: 16, 128>}, {pipeline_mode = #tpu.pipeline_mode<synchronous>, transform_indices = @transform_2, window_bounds = array<i64: 1, 128>}, {transform_indices = @transform_3, window_bounds = array<i64: 16, 128>}, {transform_indices = @transform_4, window_bounds = array<i64: 8, 128>}]} {
    %c0 = arith.constant 0 : index
    %c0_0 = arith.constant 0 : index
    %0 = vector.load %arg1[%c0, %c0_0] : memref<16x16xf32, #tpu.memory_space<vmem>>, vector<16x16xf32>
    %1 = arith.truncf %0 : vector<16x16xf32> to vector<16x16xbf16>
    %c0_1 = arith.constant 0 : index
    %c0_2 = arith.constant 0 : index
    %2 = vector.load %arg2[%c0_1, %c0_2] : memref<16x128xbf16, #tpu.memory_space<vmem>>, vector<16x128xbf16>
    %cst = arith.constant dense<0.000000e+00> : vector<16x128xf32>
    %3 = tpu.matmul %1, %2, %cst {dimension_numbers = #tpu.dot_dimension_numbers<[1], [0], [0], [1], [0, 0, 1, 1], [], []>} : vector<16x16xbf16>, vector<16x128xbf16>, vector<16x128xf32> -> vector<16x128xf32>
    %c0_3 = arith.constant 0 : index
    %c0_4 = arith.constant 0 : index
    %4 = vector.load %arg3[%c0_3, %c0_4] : memref<1x128xf32, #tpu.memory_space<vmem>>, vector<1x128xf32>
    %5 = vector.broadcast %4 : vector<1x128xf32> to vector<16x128xf32>
    %6 = arith.addf %3, %5 : vector<16x128xf32>
    %cst_5 = arith.constant 0.000000e+00 : f32
    %7 = vector.broadcast %cst_5 : f32 to vector<16x128xf32>
    %8 = arith.maximumf %6, %7 : vector<16x128xf32>
    %c0_6 = arith.constant 0 : index
    %c0_7 = arith.constant 0 : index
    %9 = vector.load %arg4[%c0_6, %c0_7] : memref<16x128xf32, #tpu.memory_space<vmem>>, vector<16x128xf32>
    tpu.vector_store %arg4[%c0_6, %c0_7], %8 {strides = array<i32>} : memref<16x128xf32, #tpu.memory_space<vmem>>, vector<16x128xf32>,
    %10 = tpu.iota {dimensions = array<i32: 0>} : vector<16x128xi32>
    %c16_i32 = arith.constant 16 : i32
    %11 = arith.muli %arg0, %c16_i32 : i32
    %12 = vector.broadcast %11 : i32 to vector<16x128xi32>
    %13 = arith.addi %10, %12 : vector<16x128xi32>
    %c12_i32 = arith.constant 12 : i32
    %14 = vector.broadcast %c12_i32 : i32 to vector<16x128xi32>
    %15 = arith.cmpi slt, %13, %14 : vector<16x128xi32>
    %cst_8 = arith.constant 0.000000e+00 : f32
    %16 = vector.broadcast %cst_8 : f32 to vector<16x128xf32>
    %17 = arith.select %15, %8, %16 : vector<16x128xi1>, vector<16x128xf32>
    %cst_9 = arith.constant dense<0.000000e+00> : vector<128xf32>
    %18 = vector.multi_reduction <add>, %17, %cst_9 [0] : vector<16x128xf32> to vector<128xf32>
    %19 = vector.shape_cast %18 : vector<128xf32> to vector<1x128xf32>
    %20 = arith.mulf %17, %17 : vector<16x128xf32>
    %cst_10 = arith.constant dense<0.000000e+00> : vector<128xf32>
    %21 = vector.multi_reduction <add>, %20, %cst_10 [0] : vector<16x128xf32> to vector<128xf32>
    %22 = vector.shape_cast %21 : vector<128xf32> to vector<1x128xf32>
    %cst_11 = arith.constant 0.000000e+00 : f32
    %23 = vector.broadcast %cst_11 : f32 to vector<6x128xf32>
    %24 = tpu.concatenate %19, %22, %23 in 0 : vector<1x128xf32>, vector<1x128xf32>, vector<6x128xf32> -> vector<8x128xf32>
    %c0_12 = arith.constant 0 : index
    %c0_13 = arith.constant 0 : index
    %25 = vector.load %arg5[%c0_12, %c0_13] : memref<8x128xf32, #tpu.memory_space<vmem>>, vector<8x128xf32>
    tpu.vector_store %arg5[%c0_12, %c0_13], %24 {strides = array<i32>} : memref<8x128xf32, #tpu.memory_space<vmem>>, vector<8x128xf32>,
    return
  }
  func.func @transform_0(%arg0: i32) -> (i32, i32) {
    %c0_i32 = arith.constant 0 : i32
    %c0_i32_0 = arith.constant 0 : i32
    return %arg0, %c0_i32 : i32, i32
  }
  func.func @transform_1(%arg0: i32) -> (i32, i32) {
    %c0_i32 = arith.constant 0 : i32
    %c0_i32_0 = arith.constant 0 : i32
    %c0_i32_1 = arith.constant 0 : i32
    return %c0_i32, %c0_i32_0 : i32, i32
  }
  func.func @transform_2(%arg0: i32) -> (i32, i32) {
    %c0_i32 = arith.constant 0 : i32
    %c0_i32_0 = arith.constant 0 : i32
    %c0_i32_1 = arith.constant 0 : i32
    return %c0_i32, %c0_i32_0 : i32, i32
  }
  func.func @transform_3(%arg0: i32) -> (i32, i32) {
    %c0_i32 = arith.constant 0 : i32
    %c0_i32_0 = arith.constant 0 : i32
    return %arg0, %c0_i32 : i32, i32
  }
  func.func @transform_4(%arg0: i32) -> (i32, i32) {
    %c0_i32 = arith.constant 0 : i32
    %c0_i32_0 = arith.constant 0 : i32
    return %arg0, %c0_i32 : i32, i32
  }
}

module attributes {stable_mosaic.version = 11 : i64} {
  func.func @_layer2_kernel(%arg0: i32, %arg1: memref<16x128xf32, #tpu.memory_space<vmem>>, %arg2: memref<1x128xf32, #tpu.memory_space<vmem>>, %arg3: memref<1x128xf32, #tpu.memory_space<vmem>>, %arg4: memref<128x128xbf16, #tpu.memory_space<vmem>>, %arg5: memref<1x128xf32, #tpu.memory_space<vmem>>, %arg6: memref<16x128xf32, #tpu.memory_space<vmem>>, %arg7: memref<8x128xf32, #tpu.memory_space<vmem>>) attributes {dimension_semantics = [#tpu.dimension_semantics<parallel>], iteration_bounds = array<i64: 1>, scalar_prefetch = 0 : i64, scratch_operands = 0 : i64, tpu.core_type = #tpu.core_type<tc>, window_params = [{transform_indices = @transform_0, window_bounds = array<i64: 16, 128>}, {pipeline_mode = #tpu.pipeline_mode<synchronous>, transform_indices = @transform_1, window_bounds = array<i64: 1, 128>}, {pipeline_mode = #tpu.pipeline_mode<synchronous>, transform_indices = @transform_2, window_bounds = array<i64: 1, 128>}, {pipeline_mode = #tpu.pipeline_mode<synchronous>, transform_indices = @transform_3, window_bounds = array<i64: 128, 128>}, {pipeline_mode = #tpu.pipeline_mode<synchronous>, transform_indices = @transform_4, window_bounds = array<i64: 1, 128>}, {transform_indices = @transform_5, window_bounds = array<i64: 16, 128>}, {transform_indices = @transform_6, window_bounds = array<i64: 8, 128>}]} {
    %c0 = arith.constant 0 : index
    %c0_0 = arith.constant 0 : index
    %0 = vector.load %arg1[%c0, %c0_0] : memref<16x128xf32, #tpu.memory_space<vmem>>, vector<16x128xf32>
    %c0_1 = arith.constant 0 : index
    %c0_2 = arith.constant 0 : index
    %1 = vector.load %arg2[%c0_1, %c0_2] : memref<1x128xf32, #tpu.memory_space<vmem>>, vector<1x128xf32>
    %2 = vector.broadcast %1 : vector<1x128xf32> to vector<16x128xf32>
    %3 = arith.mulf %0, %2 : vector<16x128xf32>
    %c0_3 = arith.constant 0 : index
    %c0_4 = arith.constant 0 : index
    %4 = vector.load %arg3[%c0_3, %c0_4] : memref<1x128xf32, #tpu.memory_space<vmem>>, vector<1x128xf32>
    %5 = vector.broadcast %4 : vector<1x128xf32> to vector<16x128xf32>
    %6 = arith.addf %3, %5 : vector<16x128xf32>
    %7 = arith.truncf %6 : vector<16x128xf32> to vector<16x128xbf16>
    %c0_5 = arith.constant 0 : index
    %c0_6 = arith.constant 0 : index
    %8 = vector.load %arg4[%c0_5, %c0_6] : memref<128x128xbf16, #tpu.memory_space<vmem>>, vector<128x128xbf16>
    %cst = arith.constant dense<0.000000e+00> : vector<16x128xf32>
    %9 = tpu.matmul %7, %8, %cst {dimension_numbers = #tpu.dot_dimension_numbers<[1], [0], [0], [1], [0, 0, 1, 1], [], []>} : vector<16x128xbf16>, vector<128x128xbf16>, vector<16x128xf32> -> vector<16x128xf32>
    %c0_7 = arith.constant 0 : index
    %c0_8 = arith.constant 0 : index
    %10 = vector.load %arg5[%c0_7, %c0_8] : memref<1x128xf32, #tpu.memory_space<vmem>>, vector<1x128xf32>
    %11 = vector.broadcast %10 : vector<1x128xf32> to vector<16x128xf32>
    %12 = arith.addf %9, %11 : vector<16x128xf32>
    %cst_9 = arith.constant 0.000000e+00 : f32
    %13 = vector.broadcast %cst_9 : f32 to vector<16x128xf32>
    %14 = arith.maximumf %12, %13 : vector<16x128xf32>
    %c0_10 = arith.constant 0 : index
    %c0_11 = arith.constant 0 : index
    %15 = vector.load %arg6[%c0_10, %c0_11] : memref<16x128xf32, #tpu.memory_space<vmem>>, vector<16x128xf32>
    tpu.vector_store %arg6[%c0_10, %c0_11], %14 {strides = array<i32>} : memref<16x128xf32, #tpu.memory_space<vmem>>, vector<16x128xf32>,
    %16 = tpu.iota {dimensions = array<i32: 0>} : vector<16x128xi32>
    %c16_i32 = arith.constant 16 : i32
    %17 = arith.muli %arg0, %c16_i32 : i32
    %18 = vector.broadcast %17 : i32 to vector<16x128xi32>
    %19 = arith.addi %16, %18 : vector<16x128xi32>
    %c12_i32 = arith.constant 12 : i32
    %20 = vector.broadcast %c12_i32 : i32 to vector<16x128xi32>
    %21 = arith.cmpi slt, %19, %20 : vector<16x128xi32>
    %cst_12 = arith.constant 0.000000e+00 : f32
    %22 = vector.broadcast %cst_12 : f32 to vector<16x128xf32>
    %23 = arith.select %21, %14, %22 : vector<16x128xi1>, vector<16x128xf32>
    %cst_13 = arith.constant dense<0.000000e+00> : vector<128xf32>
    %24 = vector.multi_reduction <add>, %23, %cst_13 [0] : vector<16x128xf32> to vector<128xf32>
    %25 = vector.shape_cast %24 : vector<128xf32> to vector<1x128xf32>
    %26 = arith.mulf %23, %23 : vector<16x128xf32>
    %cst_14 = arith.constant dense<0.000000e+00> : vector<128xf32>
    %27 = vector.multi_reduction <add>, %26, %cst_14 [0] : vector<16x128xf32> to vector<128xf32>
    %28 = vector.shape_cast %27 : vector<128xf32> to vector<1x128xf32>
    %cst_15 = arith.constant 0.000000e+00 : f32
    %29 = vector.broadcast %cst_15 : f32 to vector<6x128xf32>
    %30 = tpu.concatenate %25, %28, %29 in 0 : vector<1x128xf32>, vector<1x128xf32>, vector<6x128xf32> -> vector<8x128xf32>
    %c0_16 = arith.constant 0 : index
    %c0_17 = arith.constant 0 : index
    %31 = vector.load %arg7[%c0_16, %c0_17] : memref<8x128xf32, #tpu.memory_space<vmem>>, vector<8x128xf32>
    tpu.vector_store %arg7[%c0_16, %c0_17], %30 {strides = array<i32>} : memref<8x128xf32, #tpu.memory_space<vmem>>, vector<8x128xf32>,
    return
  }
  func.func @transform_0(%arg0: i32) -> (i32, i32) {
    %c0_i32 = arith.constant 0 : i32
    %c0_i32_0 = arith.constant 0 : i32
    return %arg0, %c0_i32 : i32, i32
  }
  func.func @transform_1(%arg0: i32) -> (i32, i32) {
    %c0_i32 = arith.constant 0 : i32
    %c0_i32_0 = arith.constant 0 : i32
    %c0_i32_1 = arith.constant 0 : i32
    return %c0_i32, %c0_i32_0 : i32, i32
  }
  func.func @transform_2(%arg0: i32) -> (i32, i32) {
    %c0_i32 = arith.constant 0 : i32
    %c0_i32_0 = arith.constant 0 : i32
    %c0_i32_1 = arith.constant 0 : i32
    return %c0_i32, %c0_i32_0 : i32, i32
  }
  func.func @transform_3(%arg0: i32) -> (i32, i32) {
    %c0_i32 = arith.constant 0 : i32
    %c0_i32_0 = arith.constant 0 : i32
    %c0_i32_1 = arith.constant 0 : i32
    return %c0_i32, %c0_i32_0 : i32, i32
  }
  func.func @transform_4(%arg0: i32) -> (i32, i32) {
    %c0_i32 = arith.constant 0 : i32
    %c0_i32_0 = arith.constant 0 : i32
    %c0_i32_1 = arith.constant 0 : i32
    return %c0_i32, %c0_i32_0 : i32, i32
  }
  func.func @transform_5(%arg0: i32) -> (i32, i32) {
    %c0_i32 = arith.constant 0 : i32
    %c0_i32_0 = arith.constant 0 : i32
    return %arg0, %c0_i32 : i32, i32
  }
  func.func @transform_6(%arg0: i32) -> (i32, i32) {
    %c0_i32 = arith.constant 0 : i32
    %c0_i32_0 = arith.constant 0 : i32
    return %arg0, %c0_i32 : i32, i32
  }
}

module attributes {stable_mosaic.version = 11 : i64} {
  func.func @_layer3_kernel(%arg0: i32, %arg1: memref<16x128xf32, #tpu.memory_space<vmem>>, %arg2: memref<1x128xf32, #tpu.memory_space<vmem>>, %arg3: memref<1x128xf32, #tpu.memory_space<vmem>>, %arg4: memref<128x128xbf16, #tpu.memory_space<vmem>>, %arg5: memref<1x128xf32, #tpu.memory_space<vmem>>, %arg6: memref<16x128xf32, #tpu.memory_space<vmem>>) attributes {dimension_semantics = [#tpu.dimension_semantics<parallel>], iteration_bounds = array<i64: 1>, scalar_prefetch = 0 : i64, scratch_operands = 0 : i64, tpu.core_type = #tpu.core_type<tc>, window_params = [{transform_indices = @transform_0, window_bounds = array<i64: 16, 128>}, {pipeline_mode = #tpu.pipeline_mode<synchronous>, transform_indices = @transform_1, window_bounds = array<i64: 1, 128>}, {pipeline_mode = #tpu.pipeline_mode<synchronous>, transform_indices = @transform_2, window_bounds = array<i64: 1, 128>}, {pipeline_mode = #tpu.pipeline_mode<synchronous>, transform_indices = @transform_3, window_bounds = array<i64: 128, 128>}, {pipeline_mode = #tpu.pipeline_mode<synchronous>, transform_indices = @transform_4, window_bounds = array<i64: 1, 128>}, {transform_indices = @transform_5, window_bounds = array<i64: 16, 128>}]} {
    %c0 = arith.constant 0 : index
    %c0_0 = arith.constant 0 : index
    %0 = vector.load %arg1[%c0, %c0_0] : memref<16x128xf32, #tpu.memory_space<vmem>>, vector<16x128xf32>
    %c0_1 = arith.constant 0 : index
    %c0_2 = arith.constant 0 : index
    %1 = vector.load %arg2[%c0_1, %c0_2] : memref<1x128xf32, #tpu.memory_space<vmem>>, vector<1x128xf32>
    %2 = vector.broadcast %1 : vector<1x128xf32> to vector<16x128xf32>
    %3 = arith.mulf %0, %2 : vector<16x128xf32>
    %c0_3 = arith.constant 0 : index
    %c0_4 = arith.constant 0 : index
    %4 = vector.load %arg3[%c0_3, %c0_4] : memref<1x128xf32, #tpu.memory_space<vmem>>, vector<1x128xf32>
    %5 = vector.broadcast %4 : vector<1x128xf32> to vector<16x128xf32>
    %6 = arith.addf %3, %5 : vector<16x128xf32>
    %7 = arith.truncf %6 : vector<16x128xf32> to vector<16x128xbf16>
    %c0_5 = arith.constant 0 : index
    %c0_6 = arith.constant 0 : index
    %8 = vector.load %arg4[%c0_5, %c0_6] : memref<128x128xbf16, #tpu.memory_space<vmem>>, vector<128x128xbf16>
    %cst = arith.constant dense<0.000000e+00> : vector<16x128xf32>
    %9 = tpu.matmul %7, %8, %cst {dimension_numbers = #tpu.dot_dimension_numbers<[1], [0], [0], [1], [0, 0, 1, 1], [], []>} : vector<16x128xbf16>, vector<128x128xbf16>, vector<16x128xf32> -> vector<16x128xf32>
    %c0_7 = arith.constant 0 : index
    %c0_8 = arith.constant 0 : index
    %10 = vector.load %arg5[%c0_7, %c0_8] : memref<1x128xf32, #tpu.memory_space<vmem>>, vector<1x128xf32>
    %11 = vector.broadcast %10 : vector<1x128xf32> to vector<16x128xf32>
    %12 = arith.addf %9, %11 : vector<16x128xf32>
    %13 = arith.negf %12 : vector<16x128xf32>
    %14 = math.exp %13 : vector<16x128xf32>
    %cst_9 = arith.constant 1.000000e+00 : f32
    %15 = vector.broadcast %cst_9 : f32 to vector<16x128xf32>
    %16 = arith.addf %15, %14 : vector<16x128xf32>
    %17 = arith.divf %15, %16 : vector<16x128xf32>
    %c0_10 = arith.constant 0 : index
    %c0_11 = arith.constant 0 : index
    %18 = vector.load %arg6[%c0_10, %c0_11] : memref<16x128xf32, #tpu.memory_space<vmem>>, vector<16x128xf32>
    tpu.vector_store %arg6[%c0_10, %c0_11], %17 {strides = array<i32>} : memref<16x128xf32, #tpu.memory_space<vmem>>, vector<16x128xf32>,
    return
  }
  func.func @transform_0(%arg0: i32) -> (i32, i32) {
    %c0_i32 = arith.constant 0 : i32
    %c0_i32_0 = arith.constant 0 : i32
    return %arg0, %c0_i32 : i32, i32
  }
  func.func @transform_1(%arg0: i32) -> (i32, i32) {
    %c0_i32 = arith.constant 0 : i32
    %c0_i32_0 = arith.constant 0 : i32
    %c0_i32_1 = arith.constant 0 : i32
    return %c0_i32, %c0_i32_0 : i32, i32
  }
  func.func @transform_2(%arg0: i32) -> (i32, i32) {
    %c0_i32 = arith.constant 0 : i32
    %c0_i32_0 = arith.constant 0 : i32
    %c0_i32_1 = arith.constant 0 : i32
    return %c0_i32, %c0_i32_0 : i32, i32
  }
  func.func @transform_3(%arg0: i32) -> (i32, i32) {
    %c0_i32 = arith.constant 0 : i32
    %c0_i32_0 = arith.constant 0 : i32
    %c0_i32_1 = arith.constant 0 : i32
    return %c0_i32, %c0_i32_0 : i32, i32
  }
  func.func @transform_4(%arg0: i32) -> (i32, i32) {
    %c0_i32 = arith.constant 0 : i32
    %c0_i32_0 = arith.constant 0 : i32
    %c0_i32_1 = arith.constant 0 : i32
    return %c0_i32, %c0_i32_0 : i32, i32
  }
  func.func @transform_5(%arg0: i32) -> (i32, i32) {
    %c0_i32 = arith.constant 0 : i32
    %c0_i32_0 = arith.constant 0 : i32
    return %arg0, %c0_i32 : i32, i32
  }
}

</mosaic_0001>

<llo_original>
// kernel: mydnn_forward.4
$region0: #{mydnn_forward.4}
  #allocation0 [shape = 'u32[]', space=smem, size = 0x4, offset = 0x4, fixed_abs, tag = 'smem constant byte address 0x4 - core index']
  #allocation1 [shape = 'u32[144,128]{1,0:T(1,128)}', space=vmem, size = 0x12000, scoped, tag = 'internal scratch']
  %s0 = inlined_call_operand.vmem [shape: f32[16,128], index: 0, kind: input, shape index: {}]
  %s1 = inlined_call_operand.vmem [shape: f32[1,128], index: 1, kind: input, shape index: {}]
  %s2 = inlined_call_operand.vmem [shape: f32[1,128], index: 2, kind: input, shape index: {}]
  %s3 = inlined_call_operand.vmem [shape: bf16[128,128], index: 3, kind: input, shape index: {}]
  %s4 = inlined_call_operand.vmem [shape: f32[1,128], index: 4, kind: input, shape index: {}]
  %s5 = inlined_call_operand.vmem [shape: f32[16,128], index: 5, kind: output, shape index: {0}]
  %s6 = inlined_call_operand.vmem [shape: f32[8,128], index: 6, kind: output, shape index: {1}]
  %7 = xla_tuple %s5, %s6
  %s8 = sld [smem:[#allocation0]]
  $region38: #{mydnn_forward.4} parent=0
    _
  %s10 = ssub.s32 1, %s8
  %s11 = scalar_select 0, %s10, %s8
  // Predicated region
  $region2: #{mydnn_forward.4} parent=0 // pred_check
    _
  $region3: #{mydnn_forward.4} parent=0 // pred_check_branch
    %13 = sbr.rel (0) target = $region5
  $region4: #{mydnn_forward.4} parent=0 // pred_region
    _
  $region5: #{mydnn_forward.4} parent=0 // pred_fallthru
    _
  // Predicated region
  $region6: #{mydnn_forward.4} parent=0 // pred_check
    _
  $region7: #{mydnn_forward.4} parent=0 // pred_check_branch
    %15 = sbr.rel (0) target = $region9
  $region8: #{mydnn_forward.4} parent=0 // pred_region
    _
  $region9: #{mydnn_forward.4} parent=0 // pred_fallthru
    _
  // Predicated region
  $region10: #{mydnn_forward.4} parent=0 // pred_check
    _
  $region11: #{mydnn_forward.4} parent=0 // pred_check_branch
    %17 = sbr.rel (0) target = $region13
  $region12: #{mydnn_forward.4} parent=0 // pred_region
    _
  $region13: #{mydnn_forward.4} parent=0 // pred_fallthru
    _
  // Predicated region
  $region14: #{mydnn_forward.4} parent=0 // pred_check
    _
  $region15: #{mydnn_forward.4} parent=0 // pred_check_branch
    %19 = sbr.rel (0) target = $region17
  $region16: #{mydnn_forward.4} parent=0 // pred_region
    _
  $region17: #{mydnn_forward.4} parent=0 // pred_fallthru
    _
  // Predicated region
  $region18: #{mydnn_forward.4} parent=0 // pred_check
    _
  $region19: #{mydnn_forward.4} parent=0 // pred_check_branch
    %21 = sbr.rel (0) target = $region21
  $region20: #{mydnn_forward.4} parent=0 // pred_region
    _
  $region21: #{mydnn_forward.4} parent=0 // pred_fallthru
    _
  %v23 = vld [vmem:[%s0] sm:$0xff]
  %v24 = vld [vmem:[%s0 + $0x8] sm:$0xff]
  %v25 = vld [vmem:[%s1] sm:$0x1]
  %v27 = vlaneseq
  %v28 = vshrl.u32 %v27, 7
  %v29 = vsub.s32 0, %v28
  %v30 = vrot.slane %v25, %v29
  %v32 = vmul.f32 %v23, %v30
  %v33 = vmul.f32 %v24, %v30
  %v34 = vld [vmem:[%s2] sm:$0x1]
  %v36 = vlaneseq
  %v37 = vshrl.u32 %v36, 7
  %v38 = vsub.s32 0, %v37
  %v39 = vrot.slane %v34, %v38
  %v41 = vadd.f32 %v32, %v39
  %v42 = vadd.f32 %v33, %v39
  %v43 = vpack.c.bf16 %v42, %v41
  %v44 = vld [vmem:[%s3] sm:$0xf]
  %v45 = vld [vmem:[%s3 + $0x4] sm:$0xf]
  %v46 = vld [vmem:[%s3 + $0x8] sm:$0xf]
  %v47 = vld [vmem:[%s3 + $0xc] sm:$0xf]
  %v48 = vld [vmem:[%s3 + $0x10] sm:$0xf]
  %v49 = vld [vmem:[%s3 + $0x14] sm:$0xf]
  %v50 = vld [vmem:[%s3 + $0x18] sm:$0xf]
  %v51 = vld [vmem:[%s3 + $0x1c] sm:$0xf]
  %v52 = vld [vmem:[%s3 + $0x20] sm:$0xf]
  %v53 = vld [vmem:[%s3 + $0x24] sm:$0xf]
  %v54 = vld [vmem:[%s3 + $0x28] sm:$0xf]
  %v55 = vld [vmem:[%s3 + $0x2c] sm:$0xf]
  %v56 = vld [vmem:[%s3 + $0x30] sm:$0xf]
  %v57 = vld [vmem:[%s3 + $0x34] sm:$0xf]
  %v58 = vld [vmem:[%s3 + $0x38] sm:$0xf]
  %v59 = vld [vmem:[%s3 + $0x3c] sm:$0xf]
  %v60 = vld [vmem:[%s4] sm:$0x1]
  %v62 = vlaneseq
  %v63 = vshrl.u32 %v62, 7
  %v64 = vsub.s32 0, %v63
  %v65 = vrot.slane %v60, %v64
  %v83 = vunpack.c.l.b16 %v44
  %v84 = vunpack.c.l.b16 %v45
  %v85 = vunpack.c.l.b16 %v46
  %v86 = vunpack.c.l.b16 %v47
  %v87 = vunpack.c.l.b16 %v48
  %v88 = vunpack.c.l.b16 %v49
  %v89 = vunpack.c.l.b16 %v50
  %v90 = vunpack.c.l.b16 %v51
  %v91 = vunpack.c.l.b16 %v52
  %v92 = vunpack.c.l.b16 %v53
  %v93 = vunpack.c.l.b16 %v54
  %v94 = vunpack.c.l.b16 %v55
  %v95 = vunpack.c.l.b16 %v56
  %v96 = vunpack.c.l.b16 %v57
  %v97 = vunpack.c.l.b16 %v58
  %v98 = vunpack.c.l.b16 %v59
  %v99 = vpack.c.b16 %v84, %v83
  %v100 = vpack.c.b16 %v86, %v85
  %v101 = vpack.c.b16 %v88, %v87
  %v102 = vpack.c.b16 %v90, %v89
  %v103 = vpack.c.b16 %v92, %v91
  %v104 = vpack.c.b16 %v94, %v93
  %v105 = vpack.c.b16 %v96, %v95
  %v106 = vpack.c.b16 %v98, %v97
  %115 = vmatprep.subr.bf16.mxu0 0
  %116 = vmatpush1.bf16.msra.mxu0 %v99
  %117 = vmatprep.subr.bf16.mxu0 0
  %118 = vmatpush1.bf16.msra.mxu0 %v100
  %119 = vmatprep.subr.bf16.mxu0 0
  %120 = vmatpush1.bf16.msra.mxu0 %v101
  %121 = vmatprep.subr.bf16.mxu0 0
  %122 = vmatpush1.bf16.msra.mxu0 %v102
  %123 = vmatprep.subr.bf16.mxu0 0
  %124 = vmatpush1.bf16.msra.mxu0 %v103
  %125 = vmatprep.subr.bf16.mxu0 0
  %126 = vmatpush1.bf16.msra.mxu0 %v104
  %127 = vmatprep.subr.bf16.mxu0 0
  %128 = vmatpush1.bf16.msra.mxu0 %v105
  %129 = vmatprep.subr.bf16.mxu0 0
  %130 = vmatpush1.bf16.msra.mxu0 %v106
  %131 = vmatprep.subr.bf16.mxu0 0
  %132 = vmatpush1.bf16.msra.mxu0 0
  %133 = vmatprep.subr.bf16.mxu0 0
  %134 = vmatpush1.bf16.msra.mxu0 0
  %135 = vmatprep.subr.bf16.mxu0 0
  %136 = vmatpush1.bf16.msra.mxu0 0
  %137 = vmatprep.subr.bf16.mxu0 0
  %138 = vmatpush1.bf16.msra.mxu0 0
  %139 = vmatprep.subr.bf16.mxu0 0
  %140 = vmatpush1.bf16.msra.mxu0 0
  %141 = vmatprep.subr.bf16.mxu0 0
  %142 = vmatpush1.bf16.msra.mxu0 0
  %143 = vmatprep.subr.bf16.mxu0 0
  %144 = vmatpush1.bf16.msra.mxu0 0
  %145 = vmatprep.subr.bf16.mxu0 0
  %146 = vmatpush1.bf16.msra.mxu0 0
  %147 = vmatprep.mubr.bf16.mxu0 0
  %148 = vmatmul.mubr.bf16.gmra.mrb[0].mxu0 %v43
  %v149 = vpop.f32.mrb[0].mxu0
  %v150 = vadd.f32 %v65, %v149
  %v151 = vpop.f32.mrb[0].mxu0
  %v152 = vpop.f32.mrb[0].mxu0
  %v153 = vadd.f32 %v65, %v152
  %v154 = vpop.f32.mrb[0].mxu0
  %155 = vdwg.mxu0
  %v156 = vmax.f32 %v150, 0.0
  %v157 = vmax.f32 %v153, 0.0
  %158 = vst [vmem:[%s5] sm:$0xff] %v156
  %159 = vst [vmem:[%s5 + $0x8] sm:$0xff] %v157
  %v160 = vlaneseq
  %v161 = vshrl.u32 %v160, 7
  %v162 = vadd.s32 %v161, 8
  %s163 = smul.u32 0, 16
  %v164 = vstv %s163
  %v165 = vadd.s32 %v161, %v164
  %v166 = vadd.s32 %v162, %v164
  %vm167 = vcmp.lt.s32.totalorder %v165, 12
  %vm168 = vcmp.lt.s32.totalorder %v166, 12
  %v169 = vsel %vm167, %v156, 0.0
  %v170 = vsel %vm168, %v157, 0.0
  %v171 = vadd.f32 %v169, %v170
  %v172 = vrot.slane %v171, 4
  %v173 = vadd.f32 %v171, %v172
  %v174 = vrot.slane %v173, 2
  %v175 = vadd.f32 %v173, %v174
  %v176 = vrot.slane %v175, 1
  %v177 = vadd.f32 %v175, %v176
  %v178 = vmul.f32 %v169, %v169
  %v179 = vmul.f32 %v170, %v170
  %v180 = vadd.f32 %v178, %v179
  %v181 = vrot.slane %v180, 4
  %v182 = vadd.f32 %v180, %v181
  %v183 = vrot.slane %v182, 2
  %v184 = vadd.f32 %v182, %v183
  %v185 = vrot.slane %v184, 1
  %v186 = vadd.f32 %v184, %v185
  %vm187 = vcmask 1040384
  %v188 = vsel %vm187, %v177, %v186
  %vm189 = vcmask 1041408
  %v190 = vsel %vm189, %v188, 0.0
  %191 = vst [vmem:[%s6] sm:$0xff] %v190
  // Predicated region
  $region22: #{mydnn_forward.4} parent=0 // pred_check
    _
  $region23: #{mydnn_forward.4} parent=0 // pred_check_branch
    %193 = sbr.rel (0) target = $region25
  $region24: #{mydnn_forward.4} parent=0 // pred_region
    _
  $region25: #{mydnn_forward.4} parent=0 // pred_fallthru
    _
  // Predicated region
  $region26: #{mydnn_forward.4} parent=0 // pred_check
    _
  $region27: #{mydnn_forward.4} parent=0 // pred_check_branch
    %195 = sbr.rel (0) target = $region29
  $region28: #{mydnn_forward.4} parent=0 // pred_region
    _
  $region29: #{mydnn_forward.4} parent=0 // pred_fallthru
    _
  // Predicated region
  $region30: #{mydnn_forward.4} parent=0 // pred_check
    _
  $region31: #{mydnn_forward.4} parent=0 // pred_check_branch
    %197 = sbr.rel (0) target = $region33
  $region32: #{mydnn_forward.4} parent=0 // pred_region
    _
  $region33: #{mydnn_forward.4} parent=0 // pred_fallthru
    _
  // Predicated region
  $region34: #{mydnn_forward.4} parent=0 // pred_check
    _
  $region35: #{mydnn_forward.4} parent=0 // pred_check_branch
    %199 = sbr.rel (0) target = $region37
  $region36: #{mydnn_forward.4} parent=0 // pred_region
    _
  $region37: #{mydnn_forward.4} parent=0 // pred_fallthru
    _

// kernel: mydnn_forward.5
$region0: #{mydnn_forward.5}
  #allocation0 [shape = 'u32[]', space=smem, size = 0x4, offset = 0x4, fixed_abs, tag = 'smem constant byte address 0x4 - core index']
  #allocation1 [shape = 'u32[144,128]{1,0:T(1,128)}', space=vmem, size = 0x12000, scoped, tag = 'internal scratch']
  %s0 = inlined_call_operand.vmem [shape: f32[16,128], index: 0, kind: input, shape index: {}]
  %s1 = inlined_call_operand.vmem [shape: f32[1,128], index: 1, kind: input, shape index: {}]
  %s2 = inlined_call_operand.vmem [shape: f32[1,128], index: 2, kind: input, shape index: {}]
  %s3 = inlined_call_operand.vmem [shape: bf16[128,128], index: 3, kind: input, shape index: {}]
  %s4 = inlined_call_operand.vmem [shape: f32[1,128], index: 4, kind: input, shape index: {}]
  %s5 = inlined_call_operand.vmem [shape: f32[16,128], index: 5, kind: output, shape index: {}]
  %s6 = sld [smem:[#allocation0]]
  $region30: #{mydnn_forward.5} parent=0
    _
  %s8 = ssub.s32 1, %s6
  %s9 = scalar_select 0, %s8, %s6
  // Predicated region
  $region2: #{mydnn_forward.5} parent=0 // pred_check
    _
  $region3: #{mydnn_forward.5} parent=0 // pred_check_branch
    %11 = sbr.rel (0) target = $region5
  $region4: #{mydnn_forward.5} parent=0 // pred_region
    _
  $region5: #{mydnn_forward.5} parent=0 // pred_fallthru
    _
  // Predicated region
  $region6: #{mydnn_forward.5} parent=0 // pred_check
    _
  $region7: #{mydnn_forward.5} parent=0 // pred_check_branch
    %13 = sbr.rel (0) target = $region9
  $region8: #{mydnn_forward.5} parent=0 // pred_region
    _
  $region9: #{mydnn_forward.5} parent=0 // pred_fallthru
    _
  // Predicated region
  $region10: #{mydnn_forward.5} parent=0 // pred_check
    _
  $region11: #{mydnn_forward.5} parent=0 // pred_check_branch
    %15 = sbr.rel (0) target = $region13
  $region12: #{mydnn_forward.5} parent=0 // pred_region
    _
  $region13: #{mydnn_forward.5} parent=0 // pred_fallthru
    _
  // Predicated region
  $region14: #{mydnn_forward.5} parent=0 // pred_check
    _
  $region15: #{mydnn_forward.5} parent=0 // pred_check_branch
    %17 = sbr.rel (0) target = $region17
  $region16: #{mydnn_forward.5} parent=0 // pred_region
    _
  $region17: #{mydnn_forward.5} parent=0 // pred_fallthru
    _
  // Predicated region
  $region18: #{mydnn_forward.5} parent=0 // pred_check
    _
  $region19: #{mydnn_forward.5} parent=0 // pred_check_branch
    %19 = sbr.rel (0) target = $region21
  $region20: #{mydnn_forward.5} parent=0 // pred_region
    _
  $region21: #{mydnn_forward.5} parent=0 // pred_fallthru
    _
  %v21 = vld [vmem:[%s0] sm:$0xff]
  %v22 = vld [vmem:[%s0 + $0x8] sm:$0xff]
  %v23 = vld [vmem:[%s1] sm:$0x1]
  %v25 = vlaneseq
  %v26 = vshrl.u32 %v25, 7
  %v27 = vsub.s32 0, %v26
  %v28 = vrot.slane %v23, %v27
  %v30 = vmul.f32 %v21, %v28
  %v31 = vmul.f32 %v22, %v28
  %v32 = vld [vmem:[%s2] sm:$0x1]
  %v34 = vlaneseq
  %v35 = vshrl.u32 %v34, 7
  %v36 = vsub.s32 0, %v35
  %v37 = vrot.slane %v32, %v36
  %v39 = vadd.f32 %v30, %v37
  %v40 = vadd.f32 %v31, %v37
  %v41 = vpack.c.bf16 %v40, %v39
  %v42 = vld [vmem:[%s3] sm:$0xf]
  %v43 = vld [vmem:[%s3 + $0x4] sm:$0xf]
  %v44 = vld [vmem:[%s3 + $0x8] sm:$0xf]
  %v45 = vld [vmem:[%s3 + $0xc] sm:$0xf]
  %v46 = vld [vmem:[%s3 + $0x10] sm:$0xf]
  %v47 = vld [vmem:[%s3 + $0x14] sm:$0xf]
  %v48 = vld [vmem:[%s3 + $0x18] sm:$0xf]
  %v49 = vld [vmem:[%s3 + $0x1c] sm:$0xf]
  %v50 = vld [vmem:[%s3 + $0x20] sm:$0xf]
  %v51 = vld [vmem:[%s3 + $0x24] sm:$0xf]
  %v52 = vld [vmem:[%s3 + $0x28] sm:$0xf]
  %v53 = vld [vmem:[%s3 + $0x2c] sm:$0xf]
  %v54 = vld [vmem:[%s3 + $0x30] sm:$0xf]
  %v55 = vld [vmem:[%s3 + $0x34] sm:$0xf]
  %v56 = vld [vmem:[%s3 + $0x38] sm:$0xf]
  %v57 = vld [vmem:[%s3 + $0x3c] sm:$0xf]
  %v58 = vld [vmem:[%s4] sm:$0x1]
  %v60 = vlaneseq
  %v61 = vshrl.u32 %v60, 7
  %v62 = vsub.s32 0, %v61
  %v63 = vrot.slane %v58, %v62
  %v81 = vunpack.c.l.b16 %v42
  %v82 = vunpack.c.l.b16 %v43
  %v83 = vunpack.c.l.b16 %v44
  %v84 = vunpack.c.l.b16 %v45
  %v85 = vunpack.c.l.b16 %v46
  %v86 = vunpack.c.l.b16 %v47
  %v87 = vunpack.c.l.b16 %v48
  %v88 = vunpack.c.l.b16 %v49
  %v89 = vunpack.c.l.b16 %v50
  %v90 = vunpack.c.l.b16 %v51
  %v91 = vunpack.c.l.b16 %v52
  %v92 = vunpack.c.l.b16 %v53
  %v93 = vunpack.c.l.b16 %v54
  %v94 = vunpack.c.l.b16 %v55
  %v95 = vunpack.c.l.b16 %v56
  %v96 = vunpack.c.l.b16 %v57
  %v97 = vpack.c.b16 %v82, %v81
  %v98 = vpack.c.b16 %v84, %v83
  %v99 = vpack.c.b16 %v86, %v85
  %v100 = vpack.c.b16 %v88, %v87
  %v101 = vpack.c.b16 %v90, %v89
  %v102 = vpack.c.b16 %v92, %v91
  %v103 = vpack.c.b16 %v94, %v93
  %v104 = vpack.c.b16 %v96, %v95
  %113 = vmatprep.subr.bf16.mxu0 0
  %114 = vmatpush1.bf16.msra.mxu0 %v97
  %115 = vmatprep.subr.bf16.mxu0 0
  %116 = vmatpush1.bf16.msra.mxu0 %v98
  %117 = vmatprep.subr.bf16.mxu0 0
  %118 = vmatpush1.bf16.msra.mxu0 %v99
  %119 = vmatprep.subr.bf16.mxu0 0
  %120 = vmatpush1.bf16.msra.mxu0 %v100
  %121 = vmatprep.subr.bf16.mxu0 0
  %122 = vmatpush1.bf16.msra.mxu0 %v101
  %123 = vmatprep.subr.bf16.mxu0 0
  %124 = vmatpush1.bf16.msra.mxu0 %v102
  %125 = vmatprep.subr.bf16.mxu0 0
  %126 = vmatpush1.bf16.msra.mxu0 %v103
  %127 = vmatprep.subr.bf16.mxu0 0
  %128 = vmatpush1.bf16.msra.mxu0 %v104
  %129 = vmatprep.subr.bf16.mxu0 0
  %130 = vmatpush1.bf16.msra.mxu0 0
  %131 = vmatprep.subr.bf16.mxu0 0
  %132 = vmatpush1.bf16.msra.mxu0 0
  %133 = vmatprep.subr.bf16.mxu0 0
  %134 = vmatpush1.bf16.msra.mxu0 0
  %135 = vmatprep.subr.bf16.mxu0 0
  %136 = vmatpush1.bf16.msra.mxu0 0
  %137 = vmatprep.subr.bf16.mxu0 0
  %138 = vmatpush1.bf16.msra.mxu0 0
  %139 = vmatprep.subr.bf16.mxu0 0
  %140 = vmatpush1.bf16.msra.mxu0 0
  %141 = vmatprep.subr.bf16.mxu0 0
  %142 = vmatpush1.bf16.msra.mxu0 0
  %143 = vmatprep.subr.bf16.mxu0 0
  %144 = vmatpush1.bf16.msra.mxu0 0
  %145 = vmatprep.mubr.bf16.mxu0 0
  %146 = vmatmul.mubr.bf16.gmra.mrb[0].mxu0 %v41
  %v147 = vpop.f32.mrb[0].mxu0
  %v148 = vadd.f32 %v63, %v147
  %v149 = vpop.f32.mrb[0].mxu0
  %v150 = vpop.f32.mrb[0].mxu0
  %v151 = vadd.f32 %v63, %v150
  %v152 = vpop.f32.mrb[0].mxu0
  %153 = vdwg.mxu0
  %v154 = vxor.u32 %v148, 2147483648
  %v155 = vxor.u32 %v151, 2147483648
  %v156 = vmul.f32 %v154, 1.442695
  %v157 = vpow.pop %v156
  %v158 = vmul.f32 %v155, 1.442695
  %v159 = vpow.pop %v158
  %v160 = vadd.f32 %v157, 1.0
  %v161 = vadd.f32 %v159, 1.0
  %v162 = vrcp.pop %v160
  %v163 = vmul.f32 1.0, %v162
  %v164 = vrcp.pop %v161
  %v165 = vmul.f32 1.0, %v164
  %166 = vst [vmem:[%s5] sm:$0xff] %v163
  %167 = vst [vmem:[%s5 + $0x8] sm:$0xff] %v165
  // Predicated region
  $region22: #{mydnn_forward.5} parent=0 // pred_check
    _
  $region23: #{mydnn_forward.5} parent=0 // pred_check_branch
    %169 = sbr.rel (0) target = $region25
  $region24: #{mydnn_forward.5} parent=0 // pred_region
    _
  $region25: #{mydnn_forward.5} parent=0 // pred_fallthru
    _
  // Predicated region
  $region26: #{mydnn_forward.5} parent=0 // pred_check
    _
  $region27: #{mydnn_forward.5} parent=0 // pred_check_branch
    %171 = sbr.rel (0) target = $region29
  $region28: #{mydnn_forward.5} parent=0 // pred_region
    _
  $region29: #{mydnn_forward.5} parent=0 // pred_fallthru
    _

// kernel: mydnn_forward.3
$region0: #{mydnn_forward.3}
  #allocation0 [shape = 'u32[]', space=smem, size = 0x4, offset = 0x4, fixed_abs, tag = 'smem constant byte address 0x4 - core index']
  #allocation1 [shape = 'u32[144,128]{1,0:T(1,128)}', space=vmem, size = 0x12000, scoped, tag = 'internal scratch']
  %s0 = inlined_call_operand.vmem [shape: f32[16,16], index: 0, kind: input, shape index: {}]
  %s1 = inlined_call_operand.vmem [shape: bf16[16,128], index: 1, kind: input, shape index: {}]
  %s2 = inlined_call_operand.vmem [shape: f32[1,128], index: 2, kind: input, shape index: {}]
  %s3 = inlined_call_operand.vmem [shape: f32[16,128], index: 3, kind: output, shape index: {0}]
  %s4 = inlined_call_operand.vmem [shape: f32[8,128], index: 4, kind: output, shape index: {1}]
  %5 = xla_tuple %s3, %s4
  %s6 = sld [smem:[#allocation0]]
  $region30: #{mydnn_forward.3} parent=0
    _
  %s8 = ssub.s32 1, %s6
  %s9 = scalar_select 0, %s8, %s6
  // Predicated region
  $region2: #{mydnn_forward.3} parent=0 // pred_check
    _
  $region3: #{mydnn_forward.3} parent=0 // pred_check_branch
    %11 = sbr.rel (0) target = $region5
  $region4: #{mydnn_forward.3} parent=0 // pred_region
    _
  $region5: #{mydnn_forward.3} parent=0 // pred_fallthru
    _
  // Predicated region
  $region6: #{mydnn_forward.3} parent=0 // pred_check
    _
  $region7: #{mydnn_forward.3} parent=0 // pred_check_branch
    %13 = sbr.rel (0) target = $region9
  $region8: #{mydnn_forward.3} parent=0 // pred_region
    _
  $region9: #{mydnn_forward.3} parent=0 // pred_fallthru
    _
  // Predicated region
  $region10: #{mydnn_forward.3} parent=0 // pred_check
    _
  $region11: #{mydnn_forward.3} parent=0 // pred_check_branch
    %15 = sbr.rel (0) target = $region13
  $region12: #{mydnn_forward.3} parent=0 // pred_region
    _
  $region13: #{mydnn_forward.3} parent=0 // pred_fallthru
    _
  %v17 = vld [vmem:[%s0] sm:$0xff]
  %v18 = vld [vmem:[%s0 + $0x8] sm:$0xff]
  %v19 = vpack.c.bf16 %v18, %v17
  %v20 = vld [vmem:[%s1] sm:$0xf]
  %v21 = vld [vmem:[%s1 + $0x4] sm:$0xf]
  %v22 = vld [vmem:[%s2] sm:$0x1]
  %v24 = vlaneseq
  %v25 = vshrl.u32 %v24, 7
  %v26 = vsub.s32 0, %v25
  %v27 = vrot.slane %v22, %v26
  %v31 = vunpack.c.l.b16 %v20
  %v32 = vunpack.c.l.b16 %v21
  %v33 = vpack.c.b16 %v32, %v31
  %vm35 = vcmask 130048
  %v37 = vsel %vm35, %v19, 0
  %39 = vmatprep.subr.bf16.mxu0 0
  %40 = vmatpush1.bf16.msra.mxu0 %v33
  %41 = vmatprep.subr.bf16.mxu0 0
  %42 = vmatpush1.bf16.msra.mxu0 0
  %43 = vmatprep.subr.bf16.mxu0 0
  %44 = vmatpush1.bf16.msra.mxu0 0
  %45 = vmatprep.subr.bf16.mxu0 0
  %46 = vmatpush1.bf16.msra.mxu0 0
  %47 = vmatprep.subr.bf16.mxu0 0
  %48 = vmatpush1.bf16.msra.mxu0 0
  %49 = vmatprep.subr.bf16.mxu0 0
  %50 = vmatpush1.bf16.msra.mxu0 0
  %51 = vmatprep.subr.bf16.mxu0 0
  %52 = vmatpush1.bf16.msra.mxu0 0
  %53 = vmatprep.subr.bf16.mxu0 0
  %54 = vmatpush1.bf16.msra.mxu0 0
  %55 = vmatprep.subr.bf16.mxu0 0
  %56 = vmatpush1.bf16.msra.mxu0 0
  %57 = vmatprep.subr.bf16.mxu0 0
  %58 = vmatpush1.bf16.msra.mxu0 0
  %59 = vmatprep.subr.bf16.mxu0 0
  %60 = vmatpush1.bf16.msra.mxu0 0
  %61 = vmatprep.subr.bf16.mxu0 0
  %62 = vmatpush1.bf16.msra.mxu0 0
  %63 = vmatprep.subr.bf16.mxu0 0
  %64 = vmatpush1.bf16.msra.mxu0 0
  %65 = vmatprep.subr.bf16.mxu0 0
  %66 = vmatpush1.bf16.msra.mxu0 0
  %67 = vmatprep.subr.bf16.mxu0 0
  %68 = vmatpush1.bf16.msra.mxu0 0
  %69 = vmatprep.subr.bf16.mxu0 0
  %70 = vmatpush1.bf16.msra.mxu0 0
  %71 = vmatprep.mubr.bf16.mxu0 0
  %72 = vmatmul.mubr.bf16.gmra.mrb[0].mxu0 %v37
  %v73 = vpop.f32.mrb[0].mxu0
  %v74 = vadd.f32 %v27, %v73
  %v75 = vpop.f32.mrb[0].mxu0
  %v76 = vpop.f32.mrb[0].mxu0
  %v77 = vadd.f32 %v27, %v76
  %v78 = vpop.f32.mrb[0].mxu0
  %79 = vdwg.mxu0
  %v80 = vmax.f32 %v74, 0.0
  %v81 = vmax.f32 %v77, 0.0
  %82 = vst [vmem:[%s3] sm:$0xff] %v80
  %83 = vst [vmem:[%s3 + $0x8] sm:$0xff] %v81
  %v84 = vlaneseq
  %v85 = vshrl.u32 %v84, 7
  %v86 = vadd.s32 %v85, 8
  %s87 = smul.u32 0, 16
  %v88 = vstv %s87
  %v89 = vadd.s32 %v85, %v88
  %v90 = vadd.s32 %v86, %v88
  %vm91 = vcmp.lt.s32.totalorder %v89, 12
  %vm92 = vcmp.lt.s32.totalorder %v90, 12
  %v93 = vsel %vm91, %v80, 0.0
  %v94 = vsel %vm92, %v81, 0.0
  %v95 = vadd.f32 %v93, %v94
  %v96 = vrot.slane %v95, 4
  %v97 = vadd.f32 %v95, %v96
  %v98 = vrot.slane %v97, 2
  %v99 = vadd.f32 %v97, %v98
  %v100 = vrot.slane %v99, 1
  %v101 = vadd.f32 %v99, %v100
  %v102 = vmul.f32 %v93, %v93
  %v103 = vmul.f32 %v94, %v94
  %v104 = vadd.f32 %v102, %v103
  %v105 = vrot.slane %v104, 4
  %v106 = vadd.f32 %v104, %v105
  %v107 = vrot.slane %v106, 2
  %v108 = vadd.f32 %v106, %v107
  %v109 = vrot.slane %v108, 1
  %v110 = vadd.f32 %v108, %v109
  %vm111 = vcmask 1040384
  %v112 = vsel %vm111, %v101, %v110
  %vm113 = vcmask 1041408
  %v114 = vsel %vm113, %v112, 0.0
  %115 = vst [vmem:[%s4] sm:$0xff] %v114
  // Predicated region
  $region14: #{mydnn_forward.3} parent=0 // pred_check
    _
  $region15: #{mydnn_forward.3} parent=0 // pred_check_branch
    %117 = sbr.rel (0) target = $region17
  $region16: #{mydnn_forward.3} parent=0 // pred_region
    _
  $region17: #{mydnn_forward.3} parent=0 // pred_fallthru
    _
  // Predicated region
  $region18: #{mydnn_forward.3} parent=0 // pred_check
    _
  $region19: #{mydnn_forward.3} parent=0 // pred_check_branch
    %119 = sbr.rel (0) target = $region21
  $region20: #{mydnn_forward.3} parent=0 // pred_region
    _
  $region21: #{mydnn_forward.3} parent=0 // pred_fallthru
    _
  // Predicated region
  $region22: #{mydnn_forward.3} parent=0 // pred_check
    _
  $region23: #{mydnn_forward.3} parent=0 // pred_check_branch
    %121 = sbr.rel (0) target = $region25
  $region24: #{mydnn_forward.3} parent=0 // pred_region
    _
  $region25: #{mydnn_forward.3} parent=0 // pred_fallthru
    _
  // Predicated region
  $region26: #{mydnn_forward.3} parent=0 // pred_check
    _
  $region27: #{mydnn_forward.3} parent=0 // pred_check_branch
    %123 = sbr.rel (0) target = $region29
  $region28: #{mydnn_forward.3} parent=0 // pred_region
    _
  $region29: #{mydnn_forward.3} parent=0 // pred_fallthru
    _

</llo_original>
